<compile_context>
chip_gen: v5e
topology: v5e:2x2
jax: 0.10.0
libtpu: 0.0.40
codegen_flags: <defaults>
</compile_context>

<pallas_src>
import functools

import jax
import jax.numpy as jnp
from jax.experimental import pallas as pl
from jax.experimental.pallas import tpu as pltpu

_MIB = 1024 * 1024


def _device_kind():
    try:
        return jax.devices()[0].device_kind.lower()
    except Exception:
        return ""


def _bf16_math_ok():
    # Only v6e / v7x have bf16 VALUs worth using; everywhere else keep f32.
    kind = _device_kind()
    return ("v6" in kind) or ("v7" in kind) or ("7x" in kind)


def _vmem_budget_and_limit():
    """(tile budget for the f32-aware working set, vmem_limit_bytes)."""
    kind = _device_kind()
    if "v5" in kind and ("lite" in kind or "v5e" in kind):
        return 40 * _MIB, 64 * _MIB     # 128 MiB physical, small scoped default
    if "v6" in kind:
        return 80 * _MIB, 100 * _MIB    # memory-bound: big tiles pay off
    if "v7" in kind or "7x" in kind:
        return 36 * _MIB, 48 * _MIB     # only 64 MiB physical VMEM per core
    return 32 * _MIB, 64 * _MIB


def _pick_block_rows(n, in_itemsize, cd_itemsize, budget_bytes):
    """Largest row tile whose working set (2 pipeline buffers in the native
    dtype + ~2 compute-dtype intermediates + 1 f32 temp) fits the budget,
    preferring a multiple of 8 that divides N (no per-step row masking)."""
    per_row = n * (2 * in_itemsize + 2 * cd_itemsize + 4)
    tm_cap = budget_bytes // max(per_row, 1)
    if tm_cap >= n:
        return n
    tm_cap = int(max(8, min(1024, (tm_cap // 8) * 8)))
    floor = max(64, tm_cap // 2)
    for tm in range(tm_cap, 7, -8):
        if n % tm == 0:
            return tm if tm >= floor else tm_cap
    return tm_cap


def _contrastive_loss_kernel(
    scores_ref,    # (TM, N)  native-dtype row block of the similarity matrix
    diag_row_ref,  # (TM, 1)  margin-folded diagonal (diag - margin), block rows
    diag_col_ref,  # (1, N)   margin-folded diagonal, full row (resident)
    *out_refs,
    compute_dtype,
    max_violation,
    tm,
    n_rows,
    needs_row_mask,
):
    n = scores_ref.shape[1]
    i = pl.program_id(0)

    zero = jnp.asarray(0.0, compute_dtype)

    # No-op casts when dtypes already match (bf16 stays bf16 on v6e/v7x).
    s = scores_ref[...].astype(compute_dtype)          # (TM, N)
    d_row = diag_row_ref[...].astype(compute_dtype)    # (TM, 1)
    d_col = diag_col_ref[...].astype(compute_dtype)    # (1, N)

    if needs_row_mask or max_violation:
        row_global = jax.lax.broadcasted_iota(jnp.int32, (tm, 1), 0) + i * tm
    if needs_row_mask:
        row_valid = row_global < n_rows

    if max_violation:
        rowmaxsum_ref, colmax_ref = out_refs
        # Single fused select: diagonal (and padded rows of a partial block)
        # are pushed to -inf BEFORE the subtractions; relu then yields exact
        # zeros there, so row max / column max / sums all see masked_fill(0).
        col_ids = jax.lax.broadcasted_iota(jnp.int32, (tm, n), 1)
        mask = col_ids == row_global
        if needs_row_mask:
            mask = jnp.logical_or(mask, jnp.logical_not(row_valid))
            d_row = jnp.where(row_valid, d_row, zero)   # keep padded rows finite
        s = jnp.where(mask, jnp.asarray(-jnp.inf, compute_dtype), s)

        cost_s = jnp.maximum(s - d_row, zero)           # caption-retrieval cost
        cost_im = jnp.maximum(s - d_col, zero)          # image-retrieval cost

        row_max = jnp.max(cost_s, axis=1, keepdims=True)            # (TM, 1)
        rowmaxsum_ref[...] = jnp.broadcast_to(
            jnp.sum(row_max, dtype=jnp.float32), rowmaxsum_ref.shape)
        col_max = jnp.max(cost_im, axis=0, keepdims=True)           # (1, N)
        colmax_ref[...] = jnp.broadcast_to(
            col_max.astype(jnp.float32), colmax_ref.shape)
    else:
        (colsum_ref,) = out_refs
        # Sum path: no per-element diagonal mask; the diagonal contribution
        # 2*relu(diag - (diag - margin)) is subtracted exactly in the wrapper.
        cost = jnp.maximum(s - d_row, zero) + jnp.maximum(s - d_col, zero)
        if needs_row_mask:
            cost = jnp.where(row_valid, cost, zero)     # select: no NaN leak
        col_sum = jnp.sum(cost, axis=0, keepdims=True, dtype=jnp.float32)  # (1, N)
        colsum_ref[...] = jnp.broadcast_to(col_sum, colsum_ref.shape)


def contrastive_loss_sim(scores, margin=0.0, max_violation=False,
                         block_rows=None, compute_dtype=None):
    """JAX/Pallas equivalent of ContrastiveLoss_sim.forward(scores)."""
    n = scores.shape[0]
    assert scores.ndim == 2 and scores.shape[1] == n, "scores must be (N, N)"

    in_dtype = jnp.dtype(scores.dtype)
    if compute_dtype is None:
        if in_dtype == jnp.dtype(jnp.bfloat16) and _bf16_math_ok():
            compute_dtype = jnp.bfloat16
        else:
            compute_dtype = jnp.float32
    compute_dtype = jnp.dtype(compute_dtype)

    # Diagonal extracted once (O(N) bytes); margin folded into it so the kernel
    # never does a per-element `margin + scores` add.
    diag = jnp.diagonal(scores).astype(compute_dtype)             # (N,)
    diag_folded = diag - jnp.asarray(margin, compute_dtype)       # (N,)
    diag_row = diag_folded.reshape(n, 1)
    diag_col = diag_folded.reshape(1, n)

    budget, vmem_limit = _vmem_budget_and_limit()
    if block_rows is None:
        tm = _pick_block_rows(n, in_dtype.itemsize, compute_dtype.itemsize, budget)
    else:
        tm = min(int(block_rows), n)
    assert tm == n or tm % 8 == 0, "block_rows must be a multiple of 8 or equal N"
    num_blocks = int(pl.cdiv(n, tm))
    needs_row_mask = (n % tm) != 0

    kernel = functools.partial(
        _contrastive_loss_kernel,
        compute_dtype=compute_dtype,
        max_violation=bool(max_violation),
        tm=tm,
        n_rows=n,
        needs_row_mask=needs_row_mask,
    )

    in_specs = [
        pl.BlockSpec((tm, n), lambda i: (i, 0)),   # row block of scores
        pl.BlockSpec((tm, 1), lambda i: (i, 0)),   # folded diag, block rows
        pl.BlockSpec((1, n), lambda i: (0, 0)),    # folded diag, full row
    ]
    if max_violation:
        out_shape = (
            jax.ShapeDtypeStruct((num_blocks, 8, 128), jnp.float32),  # row-max sums
            jax.ShapeDtypeStruct((num_blocks, 8, n), jnp.float32),    # per-block col max
        )
        out_specs = [
            pl.BlockSpec((1, 8, 128), lambda i: (i, 0, 0)),
            pl.BlockSpec((1, 8, n), lambda i: (i, 0, 0)),
        ]
        flops = 9 * n * n
    else:
        out_shape = jax.ShapeDtypeStruct((num_blocks, 8, n), jnp.float32)
        out_specs = pl.BlockSpec((1, 8, n), lambda i: (i, 0, 0))
        flops = 6 * n * n

    bytes_accessed = (n * n * in_dtype.itemsize
                      + 2 * n * compute_dtype.itemsize
                      + num_blocks * 8 * (n + 128) * 4)

    call = pl.pallas_call(
        kernel,
        out_shape=out_shape,
        grid_spec=pltpu.PrefetchScalarGridSpec(
            num_scalar_prefetch=0,
            grid=(num_blocks,),
            in_specs=in_specs,
            out_specs=out_specs,
        ),
        compiler_params=pltpu.CompilerParams(
            # Per-block independent outputs: the grid axis is truly parallel,
            # so v7x can split the row blocks across both TensorCores.
            dimension_semantics=("parallel",),
            vmem_limit_bytes=vmem_limit,
        ),
        cost_estimate=pl.CostEstimate(
            flops=flops, transcendentals=0, bytes_accessed=bytes_accessed),
    )

    if max_violation:
        rowmaxsum, colmax = call(scores, diag_row, diag_col)
        loss = jnp.sum(rowmaxsum[:, 0, 0]) + jnp.sum(jnp.max(colmax[:, 0, :], axis=0))
    else:
        colsum = call(scores, diag_row, diag_col)
        # Exact diagonal correction: same op / same operands as the in-kernel
        # diagonal elements of cost_s and cost_im (relu(diag - diag_folded)).
        corr = jnp.maximum(diag - diag_folded, jnp.asarray(0.0, compute_dtype))
        loss = jnp.sum(colsum[:, 0, :]) - 2.0 * jnp.sum(corr.astype(jnp.float32))
    return loss


def _reference_loss(scores, margin=0.0, max_violation=False):
    """Pure-JAX reference mirroring the PyTorch module (f32 math)."""
    scores = scores.astype(jnp.float32)
    n = scores.shape[0]
    diag = jnp.diag(scores).reshape(n, 1)
    cost_s = jnp.maximum(margin + scores - diag, 0.0)
    cost_im = jnp.maximum(margin + scores - diag.T, 0.0)
    eye = jnp.eye(n, dtype=bool)
    cost_s = jnp.where(eye, 0.0, cost_s)
    cost_im = jnp.where(eye, 0.0, cost_im)
    if max_violation:
        cost_s = cost_s.max(axis=1)
        cost_im = cost_im.max(axis=0)
    return cost_s.sum() + cost_im.sum()


if __name__ == "__main__":
    ok = True

    def check(scores, margin, max_violation, block_rows=None, rtol=1e-5, atol=1e-4):
        got = jax.block_until_ready(
            contrastive_loss_sim(scores, margin=margin,
                                 max_violation=max_violation,
                                 block_rows=block_rows))
        want = _reference_loss(scores, margin=margin, max_violation=max_violation)
        good = bool(jnp.allclose(got, want, rtol=rtol, atol=atol))
        if not good:
            print(f"MISMATCH n={scores.shape[0]} dtype={scores.dtype} "
                  f"margin={margin} max_violation={max_violation} "
                  f"block_rows={block_rows}: {got} vs {want}")
        return good

    # Small batch of image/caption similarity scores (N x N).
    scores8 = jax.random.normal(jax.random.PRNGKey(0), (8, 8), dtype=jnp.float32)
    for margin, mv in [(0.0, False), (0.2, False), (0.2, True)]:
        ok &= check(scores8, margin, mv)

    # Native bf16 input (bf16 elementwise math on v6e/v7x, f32 elsewhere).
    scores8_bf16 = scores8.astype(jnp.bfloat16)
    for margin, mv in [(0.2, False), (0.2, True)]:
        ok &= check(scores8_bf16, margin, mv, rtol=2e-2, atol=2e-1)

    # Multi-block grid where the tile divides N exactly (no row masks).
    scores256 = jax.random.normal(jax.random.PRNGKey(1), (256, 256), dtype=jnp.float32)
    for margin, mv in [(0.2, False), (0.2, True)]:
        ok &= check(scores256, margin, mv, rtol=1e-4, atol=1e-2)
        ok &= check(scores256, margin, mv, block_rows=64, rtol=1e-4, atol=1e-2)

    # N not a multiple of the row tile: exercises the partial-block row mask.
    scores300 = jax.random.normal(jax.random.PRNGKey(2), (300, 300), dtype=jnp.float32)
    for margin, mv in [(0.2, False), (0.2, True)]:
        ok &= check(scores300, margin, mv, rtol=1e-4, atol=1e-2)
        ok &= check(scores300, margin, mv, block_rows=128, rtol=1e-4, atol=1e-2)

    # Larger bf16 case (looser tolerance: elementwise math may run in bf16).
    scores300_bf16 = scores300.astype(jnp.bfloat16)
    ok &= check(scores300_bf16, 0.2, False, rtol=2e-2, atol=1.0)
    ok &= check(scores300_bf16, 0.2, True, rtol=2e-2, atol=1.0)

    if ok:
        print("KERNEL_OK")
</pallas_src>

<mosaic_0001>
module attributes {stable_mosaic.version = 11 : i64} {
  func.func @_contrastive_loss_kernel(%arg0: i32, %arg1: memref<8x8xf32, #tpu.memory_space<vmem>>, %arg2: memref<8x1xf32, #tpu.memory_space<vmem>>, %arg3: memref<1x8xf32, #tpu.memory_space<vmem>>, %arg4: memref<1x8x8xf32, #tpu.memory_space<vmem>>) attributes {dimension_semantics = [#tpu.dimension_semantics<parallel>], iteration_bounds = array<i64: 1>, scalar_prefetch = 0 : i64, scratch_operands = 0 : i64, tpu.core_type = #tpu.core_type<tc>, window_params = [{transform_indices = @transform_0, window_bounds = array<i64: 8, 8>}, {transform_indices = @transform_1, window_bounds = array<i64: 8, 1>}, {pipeline_mode = #tpu.pipeline_mode<synchronous>, transform_indices = @transform_2, window_bounds = array<i64: 1, 8>}, {transform_indices = @transform_3, window_bounds = array<i64: 1, 8, 8>}]} {
    %c0 = arith.constant 0 : index
    %c0_0 = arith.constant 0 : index
    %0 = vector.load %arg1[%c0, %c0_0] : memref<8x8xf32, #tpu.memory_space<vmem>>, vector<8x8xf32>
    %c0_1 = arith.constant 0 : index
    %c0_2 = arith.constant 0 : index
    %1 = vector.load %arg2[%c0_1, %c0_2] : memref<8x1xf32, #tpu.memory_space<vmem>>, vector<8x1xf32>
    %c0_3 = arith.constant 0 : index
    %c0_4 = arith.constant 0 : index
    %2 = vector.load %arg3[%c0_3, %c0_4] : memref<1x8xf32, #tpu.memory_space<vmem>>, vector<1x8xf32>
    %3 = vector.broadcast %1 : vector<8x1xf32> to vector<8x8xf32>
    %4 = arith.subf %0, %3 : vector<8x8xf32>
    %cst = arith.constant 0.000000e+00 : f32
    %5 = vector.broadcast %cst : f32 to vector<8x8xf32>
    %6 = arith.maximumf %4, %5 : vector<8x8xf32>
    %7 = vector.broadcast %2 : vector<1x8xf32> to vector<8x8xf32>
    %8 = arith.subf %0, %7 : vector<8x8xf32>
    %cst_5 = arith.constant 0.000000e+00 : f32
    %9 = vector.broadcast %cst_5 : f32 to vector<8x8xf32>
    %10 = arith.maximumf %8, %9 : vector<8x8xf32>
    %11 = arith.addf %6, %10 : vector<8x8xf32>
    %cst_6 = arith.constant dense<0.000000e+00> : vector<8xf32>
    %12 = vector.multi_reduction <add>, %11, %cst_6 [0] : vector<8x8xf32> to vector<8xf32>
    %13 = vector.shape_cast %12 : vector<8xf32> to vector<1x8xf32>
    %14 = vector.shape_cast %13 : vector<1x8xf32> to vector<1x1x8xf32>
    %15 = vector.broadcast %14 : vector<1x1x8xf32> to vector<1x8x8xf32>
    %c0_7 = arith.constant 0 : index
    %c0_8 = arith.constant 0 : index
    %c0_9 = arith.constant 0 : index
    %16 = vector.load %arg4[%c0_7, %c0_8, %c0_9] : memref<1x8x8xf32, #tpu.memory_space<vmem>>, vector<1x8x8xf32>
    tpu.vector_store %arg4[%c0_7, %c0_8, %c0_9], %15 {strides = array<i32>} : memref<1x8x8xf32, #tpu.memory_space<vmem>>, vector<1x8x8xf32>,
    return
  }
  func.func @transform_0(%arg0: i32) -> (i32, i32) {
    %c0_i32 = arith.constant 0 : i32
    %c0_i32_0 = arith.constant 0 : i32
    return %arg0, %c0_i32 : i32, i32
  }
  func.func @transform_1(%arg0: i32) -> (i32, i32) {
    %c0_i32 = arith.constant 0 : i32
    %c0_i32_0 = arith.constant 0 : i32
    return %arg0, %c0_i32 : i32, i32
  }
  func.func @transform_2(%arg0: i32) -> (i32, i32) {
    %c0_i32 = arith.constant 0 : i32
    %c0_i32_0 = arith.constant 0 : i32
    %c0_i32_1 = arith.constant 0 : i32
    return %c0_i32, %c0_i32_0 : i32, i32
  }
  func.func @transform_3(%arg0: i32) -> (i32, i32, i32) {
    %c0_i32 = arith.constant 0 : i32
    %c0_i32_0 = arith.constant 0 : i32
    %c0_i32_1 = arith.constant 0 : i32
    return %arg0, %c0_i32, %c0_i32_0 : i32, i32, i32
  }
}

</mosaic_0001>

<llo_original>
// kernel: tpu_custom_call.1
$region0: #{tpu_custom_call.1}
  #allocation0 [shape = 'u32[]', space=smem, size = 0x4, offset = 0x4, fixed_abs, tag = 'smem constant byte address 0x4 - core index']
  #allocation1 [shape = 'u32[72,128]{1,0:T(1,128)}', space=vmem, size = 0x9000, scoped, tag = 'internal scratch']
  %s0 = inlined_call_operand.vmem [shape: f32[8,8], index: 0, kind: input, shape index: {}]
  %s1 = inlined_call_operand.vmem [shape: f32[8,1], index: 1, kind: input, shape index: {}]
  %s2 = inlined_call_operand.vmem [shape: f32[1,8], index: 2, kind: input, shape index: {}]
  %s3 = inlined_call_operand.hbm [shape: f32[1,8,8], index: 3, kind: output, shape index: {}]
  %s4 = sld [smem:[#allocation0]]
  $region22: #{tpu_custom_call.1} parent=0
    _
  %s6 = ssub.s32 1, %s4
  %s7 = scalar_select 0, %s6, %s4
  $region1: #{tpu_custom_call.1} parent=0
    #allocation2 [shape = 'u8[4096]{0}', space=vmem, size = 0x1000, scoped, tag = 'output window, operand 0, single buffered']
    #allocation3 [shape = 's32[1]{0}', space=sflag, size = 0x4, scoped, tag = 'scoped memory for tpu_custom_call.1']
    %8 = vsyncpa [#allocation3], 0
    // Predicated region
    $region2: #{tpu_custom_call.1} parent=1 // pred_check
      _
    $region3: #{tpu_custom_call.1} parent=1 // pred_check_branch
      %10 = sbr.rel (0) target = $region5
    $region4: #{tpu_custom_call.1} parent=1 // pred_region
      _
    $region5: #{tpu_custom_call.1} parent=1 // pred_fallthru
      _
    // Predicated region
    $region6: #{tpu_custom_call.1} parent=1 // pred_check
      _
    $region7: #{tpu_custom_call.1} parent=1 // pred_check_branch
      %12 = sbr.rel (0) target = $region9
    $region8: #{tpu_custom_call.1} parent=1 // pred_region
      _
    $region9: #{tpu_custom_call.1} parent=1 // pred_fallthru
      _
    // Predicated region
    $region10: #{tpu_custom_call.1} parent=1 // pred_check
      _
    $region11: #{tpu_custom_call.1} parent=1 // pred_check_branch
      %14 = sbr.rel (0) target = $region13
    $region12: #{tpu_custom_call.1} parent=1 // pred_region
      _
    $region13: #{tpu_custom_call.1} parent=1 // pred_fallthru
      _
    %v15 = vld [vmem:[%s0] sm:$0xff]
    %v16 = vld [vmem:[%s1] sm:$0xff]
    %v17 = vld [vmem:[%s2] sm:$0x1]
    %19 = vset.pattern.permute.xlu0 0
    %20 = vperm.xlu0 %19, %v16
    %v21 = vpop.permute.xlu0 %20
    %v23 = vsub.f32 %v15, %v21
    %v24 = vmax.f32 %v23, 0.0
    %v26 = vperm.slane %v17, 0
    %v28 = vsub.f32 %v15, %v26
    %v29 = vmax.f32 %v28, 0.0
    %v30 = vadd.f32 %v24, %v29
    %vm31 = vcmask 64512
    %v32 = vsel %vm31, %v30, 0.0
    %v33 = vrot.slane %v32, 4
    %v34 = vadd.f32 %v32, %v33
    %v35 = vrot.slane %v34, 2
    %v36 = vadd.f32 %v34, %v35
    %v37 = vrot.slane %v36, 1
    %v38 = vadd.f32 %v36, %v37
    %39 = vst.msk [vmem:[#allocation2] sm:$0xff] %vm31, %v38
    // Predicated region
    $region14: #{tpu_custom_call.1} parent=1 // pred_check
      _
    $region15: #{tpu_custom_call.1} parent=1 // pred_check_branch
      %41 = sbr.rel (0) target = $region17
    $region16: #{tpu_custom_call.1} parent=1 // pred_region
      %43 = vsyncadd [#allocation3], 0
      %s45 = sshll.u32 [#allocation2], 4
      %s46 = int_to_ptr.vmem [resolvable:$true] %s45
      %s47 = sshll.u32 %s3, 4
      %s48 = int_to_ptr.hbm [resolvable:$true] %s47
      %50 = dma.vmem_to_hbm [thread:$0]  %s46, 128, %s48, [#allocation3]
    $region17: #{tpu_custom_call.1} parent=1 // pred_fallthru
      _
    // Predicated region
    $region18: #{tpu_custom_call.1} parent=1 // pred_check
      _
    $region19: #{tpu_custom_call.1} parent=1 // pred_check_branch
      %52 = sbr.rel (0) target = $region21
    $region20: #{tpu_custom_call.1} parent=1 // pred_region
      %54 = dma.done [#allocation3], 128
    $region21: #{tpu_custom_call.1} parent=1 // pred_fallthru
      _
    %55 = vsyncpa [#allocation3], 1

</llo_original>
